<compile_context>
chip_gen: v7x
topology: tpu7x:2x2x1
jax: 0.10.0
libtpu: 0.0.40
codegen_flags: <defaults>
</compile_context>

<pallas_src>
import functools

import jax
import jax.numpy as jnp
from jax import lax
from jax.experimental import pallas as pl
from jax.experimental.pallas import tpu as pltpu

EPS = 1e-5
K = 9
PAD = 4
# TODO(synk): only stride=1 (the module default) is implemented.


def _conv_stats_kernel(x_ref, w_ref, y_ref, stats_ref, *, TL, L):
    """Pass 1: k=9 conv as a single im2col matmul + per-tile BN partial stats.

    x_ref:     (1, L_pad + 2*PAD, C)  halo-padded input (resident per batch row)
    w_ref:     (K*C, F_pad)           conv weights in im2col order (k*C + c, f)
    y_ref:     (1, TL, F_pad)         conv output tile (pre-BN)
    stats_ref: (1, 1, 2, F_pad)       per-tile [sum(y); sum(y*y)] over valid rows
    """
    l = pl.program_id(1)
    base = l * TL
    if TL % 8 == 0:
        base = pl.multiple_of(base, 8)

    # im2col: 9 shifted (TL, C) windows read directly from the VMEM ref and
    # concatenated along lanes -> ONE (TL, K*C) @ (K*C, F_pad) MXU matmul
    # instead of 9 tiny matmuls + 8 VPU adds.
    taps = [x_ref[0, pl.ds(base + k, TL), :] for k in range(K)]
    cols = jnp.concatenate(taps, axis=-1)
    cols = cols.astype(w_ref.dtype)  # bf16 on the fast path, f32 acc below
    y = jnp.dot(cols, w_ref[...], preferred_element_type=jnp.float32)

    # Single-pass BN statistics (sum, sum of squares).  Rows >= L only exist
    # because of L tiling padding and are masked out of the statistics.
    row = lax.broadcasted_iota(jnp.int32, (TL, 1), 0) + l * TL
    valid = (row < L).astype(jnp.float32)
    ym = y * valid
    s = jnp.sum(ym, axis=0, keepdims=True)        # (1, F_pad)
    q = jnp.sum(ym * y, axis=0, keepdims=True)    # (1, F_pad)
    stats_ref[0, 0] = jnp.concatenate([s, q], axis=0)

    y_ref[0] = y.astype(y_ref.dtype)


def _bn_relu_kernel(y_ref, aff_ref, out_ref, *, F):
    """Pass 2: y*scale + shift, ReLU, transpose tile to the NCL output layout.

    y_ref:   (1, TL, F_pad)  conv output tile
    aff_ref: (2, F_pad)      row 0 = scale, row 1 = shift (BN+affine folded)
    out_ref: (1, F, TL)      output tile, channels-first (PyTorch NCL)
    """
    y = y_ref[0].astype(jnp.float32)
    aff = aff_ref[...]
    out = jnp.maximum(y * aff[0:1, :] + aff[1:2, :], 0.0)   # (TL, F_pad) f32
    out_t = jnp.transpose(out)                               # (F_pad, TL), XLU
    out_ref[0] = out_t[:F, :].astype(out_ref.dtype)


def cbr_1d(x_ncl, w_fck, gamma, beta, *, compute_dtype=jnp.bfloat16, tl_max=512):
    """CBR_1D forward.  x_ncl (N, C, L) -> (N, F, L), float32 (PyTorch layout).

    compute_dtype: dtype fed to the conv matmul and used to store the conv
    intermediate (bfloat16 = MXU fast path; float32 = exact path).
    """
    N, C, L = x_ncl.shape
    F, C_w, K_w = w_fck.shape
    assert C_w == C and K_w == K

    F_pad = ((F + 127) // 128) * 128          # lane-dense conv output / weights
    TL = L if L <= tl_max else tl_max         # L tile (full L for small inputs)
    nLb = pl.cdiv(L, TL)
    L_pad = nLb * TL
    x_bytes = jnp.dtype(x_ncl.dtype).itemsize
    c_bytes = jnp.dtype(compute_dtype).itemsize

    # NCL -> NLC (channels in lanes) + conv halo + tiling pad along L.  These
    # fuse into a single XLA pass over the (small, C-channel) input.
    # TODO(synk): in a full U-Net keep activations in NLC between layers and
    # drop this transpose entirely.
    x_nlc = jnp.transpose(x_ncl, (0, 2, 1))
    x_p = jnp.pad(x_nlc, ((0, 0), (PAD, PAD + (L_pad - L)), (0, 0)))

    # Conv weights (F, C, K) -> im2col layout (K*C, F_pad), zero lane padding.
    w2 = jnp.transpose(w_fck, (2, 1, 0)).reshape(K * C, F)
    w2 = jnp.pad(w2, ((0, 0), (0, F_pad - F))).astype(compute_dtype)

    grid = (N, nLb)
    cparams = pltpu.CompilerParams(
        dimension_semantics=("parallel", "parallel"),  # megacore-shardable
        vmem_limit_bytes=32 * 1024 * 1024,
    )

    # ------------------- pass 1: conv + partial BN stats -------------------
    y_int, stats = pl.pallas_call(
        functools.partial(_conv_stats_kernel, TL=TL, L=L),
        grid_spec=pltpu.PrefetchScalarGridSpec(
            num_scalar_prefetch=0,
            grid=grid,
            in_specs=[
                # Full padded-L strip per batch row; block index is constant in
                # `l`, so the strip stays resident in VMEM across the L tiles
                # (halo handled in-kernel via pl.ds windows).
                pl.BlockSpec((1, L_pad + 2 * PAD, C), lambda n, l: (n, 0, 0)),
                pl.BlockSpec((K * C, F_pad), lambda n, l: (0, 0)),
            ],
            out_specs=[
                pl.BlockSpec((1, TL, F_pad), lambda n, l: (n, l, 0)),
                pl.BlockSpec((1, 1, 2, F_pad), lambda n, l: (n, l, 0, 0)),
            ],
        ),
        out_shape=[
            jax.ShapeDtypeStruct((N, L_pad, F_pad), compute_dtype),
            jax.ShapeDtypeStruct((N, nLb, 2, F_pad), jnp.float32),
        ],
        compiler_params=cparams,
        cost_estimate=pl.CostEstimate(
            flops=2 * N * L_pad * K * C * F_pad,
            transcendentals=0,
            bytes_accessed=(N * (L_pad + 2 * PAD) * C * x_bytes
                            + K * C * F_pad * c_bytes
                            + N * L_pad * F_pad * c_bytes
                            + N * nLb * 2 * F_pad * 4),
        ),
    )(x_p, w2)

    # ------- tiny global reduction + BN/affine folding (XLA, O(F)) ---------
    s = jnp.sum(stats, axis=(0, 1))                       # (2, F_pad)
    count = float(N * L)
    mean = s[0] / count
    var = jnp.maximum(s[1] / count - mean * mean, 0.0)    # biased (training BN)
    gamma_p = jnp.pad(gamma.astype(jnp.float32), (0, F_pad - F))
    beta_p = jnp.pad(beta.astype(jnp.float32), (0, F_pad - F))
    scale = gamma_p * lax.rsqrt(var + EPS)
    shift = beta_p - mean * scale
    aff = jnp.stack([scale, shift])                       # (2, F_pad)

    # ------------- pass 2: normalize + ReLU + transpose to NCL -------------
    out = pl.pallas_call(
        functools.partial(_bn_relu_kernel, F=F),
        grid_spec=pltpu.PrefetchScalarGridSpec(
            num_scalar_prefetch=0,
            grid=grid,
            in_specs=[
                pl.BlockSpec((1, TL, F_pad), lambda n, l: (n, l, 0)),
                pl.BlockSpec((2, F_pad), lambda n, l: (0, 0)),
            ],
            out_specs=pl.BlockSpec((1, F, TL), lambda n, l: (n, 0, l)),
        ),
        out_shape=jax.ShapeDtypeStruct((N, F, L_pad), jnp.float32),
        compiler_params=cparams,
        cost_estimate=pl.CostEstimate(
            flops=3 * N * L_pad * F_pad,
            transcendentals=0,
            bytes_accessed=(N * L_pad * F_pad * c_bytes + N * F * L_pad * 4),
        ),
    )(y_int, aff)

    return out if L_pad == L else out[:, :, :L]


# ---------------------------------------------------------------------------
# Pure-JAX reference (mirrors torch Conv1d NCL + training-mode BatchNorm1d)
# ---------------------------------------------------------------------------
def ref_forward(x_ncl, w_fck, gamma, beta):
    y = lax.conv_general_dilated(
        x_ncl, w_fck, window_strides=(1,), padding=((PAD, PAD),),
        dimension_numbers=("NCH", "OIH", "NCH"),
        precision=lax.Precision.HIGHEST)
    m = jnp.mean(y, axis=(0, 2), keepdims=True)
    v = jnp.mean((y - m) ** 2, axis=(0, 2), keepdims=True)
    y = (y - m) * lax.rsqrt(v + EPS)
    y = y * gamma[None, :, None] + beta[None, :, None]
    return jnp.maximum(y, 0.0)


if __name__ == "__main__":
    N, C, L, F = 2, 4, 16, 8   # batch=2, in_channels=4, spatial=16, out_channels=8

    key = jax.random.PRNGKey(0)
    ks = jax.random.split(key, 4)
    x = jax.random.normal(ks[0], (N, C, L), jnp.float32)
    w = jax.random.normal(ks[1], (F, C, K), jnp.float32) * 0.1        # Conv1d k=9
    gamma = 1.0 + 0.1 * jax.random.normal(ks[2], (F,), jnp.float32)   # BN weight
    beta = 0.1 * jax.random.normal(ks[3], (F,), jnp.float32)          # BN bias

    y_ref = ref_forward(x, w, gamma, beta)

    run = jax.jit(cbr_1d, static_argnames=("compute_dtype", "tl_max"))

    # Exact path (f32 matmul) — tight-ish check of the full pipeline.
    y32 = jax.block_until_ready(run(x, w, gamma, beta, compute_dtype=jnp.float32))
    assert y32.shape == (N, F, L)
    assert jnp.allclose(y32, y_ref, rtol=2e-2, atol=2e-2), \
        f"f32 path max err {jnp.max(jnp.abs(y32 - y_ref))}"

    # Fast path (bf16 MXU inputs, f32 accumulate / BN math).
    ybf = jax.block_until_ready(run(x, w, gamma, beta, compute_dtype=jnp.bfloat16))
    assert ybf.shape == (N, F, L)
    assert jnp.allclose(ybf, y_ref, rtol=5e-2, atol=5e-2), \
        f"bf16 path max err {jnp.max(jnp.abs(ybf - y_ref))}"

    print("KERNEL_OK")
</pallas_src>

<mosaic_0001>
module attributes {stable_mosaic.version = 11 : i64} {
  func.func @_conv_stats_kernel(%arg0: i32, %arg1: i32, %arg2: memref<1x24x4xf32, #tpu.memory_space<vmem>>, %arg3: memref<36x128xf32, #tpu.memory_space<vmem>>, %arg4: memref<1x16x128xf32, #tpu.memory_space<vmem>>, %arg5: memref<1x1x2x128xf32, #tpu.memory_space<vmem>>) attributes {dimension_semantics = [#tpu.dimension_semantics<parallel>, #tpu.dimension_semantics<parallel>], iteration_bounds = array<i64: 2, 1>, scalar_prefetch = 0 : i64, scratch_operands = 0 : i64, tpu.core_type = #tpu.core_type<tc>, window_params = [{transform_indices = @transform_0, window_bounds = array<i64: 1, 24, 4>}, {pipeline_mode = #tpu.pipeline_mode<synchronous>, transform_indices = @transform_1, window_bounds = array<i64: 36, 128>}, {transform_indices = @transform_2, window_bounds = array<i64: 1, 16, 128>}, {transform_indices = @transform_3, window_bounds = array<i64: 1, 1, 2, 128>}]} {
    %c16_i32 = arith.constant 16 : i32
    %0 = arith.muli %arg1, %c16_i32 : i32
    %1 = tpu.assume_multiple %0, 8 : i32
    %c0_i32 = arith.constant 0 : i32
    %2 = arith.addi %1, %c0_i32 : i32
    %c0 = arith.constant 0 : index
    %3 = arith.index_cast %2 : i32 to index
    %c0_0 = arith.constant 0 : index
    %4 = vector.load %arg2[%c0, %3, %c0_0] : memref<1x24x4xf32, #tpu.memory_space<vmem>>, vector<1x16x4xf32>
    %5 = vector.shape_cast %4 : vector<1x16x4xf32> to vector<16x4xf32>
    %c1_i32 = arith.constant 1 : i32
    %6 = arith.addi %1, %c1_i32 : i32
    %c0_1 = arith.constant 0 : index
    %7 = arith.index_cast %6 : i32 to index
    %c0_2 = arith.constant 0 : index
    %8 = vector.load %arg2[%c0_1, %7, %c0_2] : memref<1x24x4xf32, #tpu.memory_space<vmem>>, vector<1x16x4xf32>
    %9 = vector.shape_cast %8 : vector<1x16x4xf32> to vector<16x4xf32>
    %c2_i32 = arith.constant 2 : i32
    %10 = arith.addi %1, %c2_i32 : i32
    %c0_3 = arith.constant 0 : index
    %11 = arith.index_cast %10 : i32 to index
    %c0_4 = arith.constant 0 : index
    %12 = vector.load %arg2[%c0_3, %11, %c0_4] : memref<1x24x4xf32, #tpu.memory_space<vmem>>, vector<1x16x4xf32>
    %13 = vector.shape_cast %12 : vector<1x16x4xf32> to vector<16x4xf32>
    %c3_i32 = arith.constant 3 : i32
    %14 = arith.addi %1, %c3_i32 : i32
    %c0_5 = arith.constant 0 : index
    %15 = arith.index_cast %14 : i32 to index
    %c0_6 = arith.constant 0 : index
    %16 = vector.load %arg2[%c0_5, %15, %c0_6] : memref<1x24x4xf32, #tpu.memory_space<vmem>>, vector<1x16x4xf32>
    %17 = vector.shape_cast %16 : vector<1x16x4xf32> to vector<16x4xf32>
    %c4_i32 = arith.constant 4 : i32
    %18 = arith.addi %1, %c4_i32 : i32
    %c0_7 = arith.constant 0 : index
    %19 = arith.index_cast %18 : i32 to index
    %c0_8 = arith.constant 0 : index
    %20 = vector.load %arg2[%c0_7, %19, %c0_8] : memref<1x24x4xf32, #tpu.memory_space<vmem>>, vector<1x16x4xf32>
    %21 = vector.shape_cast %20 : vector<1x16x4xf32> to vector<16x4xf32>
    %c5_i32 = arith.constant 5 : i32
    %22 = arith.addi %1, %c5_i32 : i32
    %c0_9 = arith.constant 0 : index
    %23 = arith.index_cast %22 : i32 to index
    %c0_10 = arith.constant 0 : index
    %24 = vector.load %arg2[%c0_9, %23, %c0_10] : memref<1x24x4xf32, #tpu.memory_space<vmem>>, vector<1x16x4xf32>
    %25 = vector.shape_cast %24 : vector<1x16x4xf32> to vector<16x4xf32>
    %c6_i32 = arith.constant 6 : i32
    %26 = arith.addi %1, %c6_i32 : i32
    %c0_11 = arith.constant 0 : index
    %27 = arith.index_cast %26 : i32 to index
    %c0_12 = arith.constant 0 : index
    %28 = vector.load %arg2[%c0_11, %27, %c0_12] : memref<1x24x4xf32, #tpu.memory_space<vmem>>, vector<1x16x4xf32>
    %29 = vector.shape_cast %28 : vector<1x16x4xf32> to vector<16x4xf32>
    %c7_i32 = arith.constant 7 : i32
    %30 = arith.addi %1, %c7_i32 : i32
    %c0_13 = arith.constant 0 : index
    %31 = arith.index_cast %30 : i32 to index
    %c0_14 = arith.constant 0 : index
    %32 = vector.load %arg2[%c0_13, %31, %c0_14] : memref<1x24x4xf32, #tpu.memory_space<vmem>>, vector<1x16x4xf32>
    %33 = vector.shape_cast %32 : vector<1x16x4xf32> to vector<16x4xf32>
    %c8_i32 = arith.constant 8 : i32
    %34 = arith.addi %1, %c8_i32 : i32
    %c0_15 = arith.constant 0 : index
    %35 = arith.index_cast %34 : i32 to index
    %c0_16 = arith.constant 0 : index
    %36 = vector.load %arg2[%c0_15, %35, %c0_16] : memref<1x24x4xf32, #tpu.memory_space<vmem>>, vector<1x16x4xf32>
    %37 = vector.shape_cast %36 : vector<1x16x4xf32> to vector<16x4xf32>
    %38 = tpu.concatenate %5, %9, %13, %17, %21, %25, %29, %33, %37 in 1 : vector<16x4xf32>, vector<16x4xf32>, vector<16x4xf32>, vector<16x4xf32>, vector<16x4xf32>, vector<16x4xf32>, vector<16x4xf32>, vector<16x4xf32>, vector<16x4xf32> -> vector<16x36xf32>
    %c0_17 = arith.constant 0 : index
    %c0_18 = arith.constant 0 : index
    %39 = vector.load %arg3[%c0_17, %c0_18] : memref<36x128xf32, #tpu.memory_space<vmem>>, vector<36x128xf32>
    %cst = arith.constant dense<0.000000e+00> : vector<16x128xf32>
    %40 = tpu.matmul %38, %39, %cst {dimension_numbers = #tpu.dot_dimension_numbers<[1], [0], [0], [1], [0, 0, 1, 1], [], []>} : vector<16x36xf32>, vector<36x128xf32>, vector<16x128xf32> -> vector<16x128xf32>
    %41 = tpu.iota {dimensions = array<i32: 0>} : vector<16x1xi32>
    %c16_i32_19 = arith.constant 16 : i32
    %42 = arith.muli %arg1, %c16_i32_19 : i32
    %43 = vector.broadcast %42 : i32 to vector<16x1xi32>
    %44 = arith.addi %41, %43 : vector<16x1xi32>
    %c16_i32_20 = arith.constant 16 : i32
    %45 = vector.broadcast %c16_i32_20 : i32 to vector<16x1xi32>
    %46 = arith.cmpi slt, %44, %45 : vector<16x1xi32>
    %47 = arith.extui %46 : vector<16x1xi1> to vector<16x1xi32>
    %48 = arith.sitofp %47 : vector<16x1xi32> to vector<16x1xf32>
    %49 = vector.broadcast %48 : vector<16x1xf32> to vector<16x128xf32>
    %50 = arith.mulf %40, %49 : vector<16x128xf32>
    %cst_21 = arith.constant dense<0.000000e+00> : vector<128xf32>
    %51 = vector.multi_reduction <add>, %50, %cst_21 [0] : vector<16x128xf32> to vector<128xf32>
    %52 = vector.shape_cast %51 : vector<128xf32> to vector<1x128xf32>
    %53 = arith.mulf %50, %40 : vector<16x128xf32>
    %cst_22 = arith.constant dense<0.000000e+00> : vector<128xf32>
    %54 = vector.multi_reduction <add>, %53, %cst_22 [0] : vector<16x128xf32> to vector<128xf32>
    %55 = vector.shape_cast %54 : vector<128xf32> to vector<1x128xf32>
    %56 = tpu.concatenate %52, %55 in 0 : vector<1x128xf32>, vector<1x128xf32> -> vector<2x128xf32>
    %c0_23 = arith.constant 0 : index
    %c0_24 = arith.constant 0 : index
    %c0_25 = arith.constant 0 : index
    %c0_26 = arith.constant 0 : index
    %57 = vector.load %arg5[%c0_23, %c0_24, %c0_25, %c0_26] : memref<1x1x2x128xf32, #tpu.memory_space<vmem>>, vector<1x1x2x128xf32>
    %58 = vector.shape_cast %57 : vector<1x1x2x128xf32> to vector<2x128xf32>
    %59 = vector.shape_cast %56 : vector<2x128xf32> to vector<1x1x2x128xf32>
    tpu.vector_store %arg5[%c0_23, %c0_24, %c0_25, %c0_26], %59 {strides = array<i32>} : memref<1x1x2x128xf32, #tpu.memory_space<vmem>>, vector<1x1x2x128xf32>,
    %c0_27 = arith.constant 0 : index
    %c0_28 = arith.constant 0 : index
    %c0_29 = arith.constant 0 : index
    %60 = vector.load %arg4[%c0_27, %c0_28, %c0_29] : memref<1x16x128xf32, #tpu.memory_space<vmem>>, vector<1x16x128xf32>
    %61 = vector.shape_cast %60 : vector<1x16x128xf32> to vector<16x128xf32>
    %62 = vector.shape_cast %40 : vector<16x128xf32> to vector<1x16x128xf32>
    tpu.vector_store %arg4[%c0_27, %c0_28, %c0_29], %62 {strides = array<i32>} : memref<1x16x128xf32, #tpu.memory_space<vmem>>, vector<1x16x128xf32>,
    return
  }
  func.func @transform_0(%arg0: i32, %arg1: i32) -> (i32, i32, i32) {
    %c0_i32 = arith.constant 0 : i32
    %c0_i32_0 = arith.constant 0 : i32
    %c0_i32_1 = arith.constant 0 : i32
    return %arg0, %c0_i32, %c0_i32_0 : i32, i32, i32
  }
  func.func @transform_1(%arg0: i32, %arg1: i32) -> (i32, i32) {
    %c0_i32 = arith.constant 0 : i32
    %c0_i32_0 = arith.constant 0 : i32
    %c0_i32_1 = arith.constant 0 : i32
    return %c0_i32, %c0_i32_0 : i32, i32
  }
  func.func @transform_2(%arg0: i32, %arg1: i32) -> (i32, i32, i32) {
    %c0_i32 = arith.constant 0 : i32
    %c0_i32_0 = arith.constant 0 : i32
    return %arg0, %arg1, %c0_i32 : i32, i32, i32
  }
  func.func @transform_3(%arg0: i32, %arg1: i32) -> (i32, i32, i32, i32) {
    %c0_i32 = arith.constant 0 : i32
    %c0_i32_0 = arith.constant 0 : i32
    %c0_i32_1 = arith.constant 0 : i32
    return %arg0, %arg1, %c0_i32, %c0_i32_0 : i32, i32, i32, i32
  }
}

module attributes {stable_mosaic.version = 11 : i64} {
  func.func @_bn_relu_kernel(%arg0: i32, %arg1: i32, %arg2: memref<1x16x128xf32, #tpu.memory_space<vmem>>, %arg3: memref<2x128xf32, #tpu.memory_space<vmem>>, %arg4: memref<1x8x16xf32, #tpu.memory_space<vmem>>) attributes {dimension_semantics = [#tpu.dimension_semantics<parallel>, #tpu.dimension_semantics<parallel>], iteration_bounds = array<i64: 2, 1>, scalar_prefetch = 0 : i64, scratch_operands = 0 : i64, tpu.core_type = #tpu.core_type<tc>, window_params = [{transform_indices = @transform_0, window_bounds = array<i64: 1, 16, 128>}, {pipeline_mode = #tpu.pipeline_mode<synchronous>, transform_indices = @transform_1, window_bounds = array<i64: 2, 128>}, {transform_indices = @transform_2, window_bounds = array<i64: 1, 8, 16>}]} {
    %c0 = arith.constant 0 : index
    %c0_0 = arith.constant 0 : index
    %c0_1 = arith.constant 0 : index
    %0 = vector.load %arg2[%c0, %c0_0, %c0_1] : memref<1x16x128xf32, #tpu.memory_space<vmem>>, vector<1x16x128xf32>
    %1 = vector.shape_cast %0 : vector<1x16x128xf32> to vector<16x128xf32>
    %c0_2 = arith.constant 0 : index
    %c0_3 = arith.constant 0 : index
    %2 = vector.load %arg3[%c0_2, %c0_3] : memref<2x128xf32, #tpu.memory_space<vmem>>, vector<2x128xf32>
    %3 = vector.extract_strided_slice %2 {offsets = [0, 0], sizes = [1, 128], strides = [1, 1]} : vector<2x128xf32> to vector<1x128xf32>
    %4 = vector.broadcast %3 : vector<1x128xf32> to vector<16x128xf32>
    %5 = arith.mulf %1, %4 : vector<16x128xf32>
    %6 = vector.extract_strided_slice %2 {offsets = [1, 0], sizes = [1, 128], strides = [1, 1]} : vector<2x128xf32> to vector<1x128xf32>
    %7 = vector.broadcast %6 : vector<1x128xf32> to vector<16x128xf32>
    %8 = arith.addf %5, %7 : vector<16x128xf32>
    %cst = arith.constant 0.000000e+00 : f32
    %9 = vector.broadcast %cst : f32 to vector<16x128xf32>
    %10 = arith.maximumf %8, %9 : vector<16x128xf32>
    %11 = tpu.transpose %10, [1, 0] : vector<16x128xf32> -> vector<128x16xf32>
    %12 = vector.extract_strided_slice %11 {offsets = [0, 0], sizes = [8, 16], strides = [1, 1]} : vector<128x16xf32> to vector<8x16xf32>
    %c0_4 = arith.constant 0 : index
    %c0_5 = arith.constant 0 : index
    %c0_6 = arith.constant 0 : index
    %13 = vector.load %arg4[%c0_4, %c0_5, %c0_6] : memref<1x8x16xf32, #tpu.memory_space<vmem>>, vector<1x8x16xf32>
    %14 = vector.shape_cast %13 : vector<1x8x16xf32> to vector<8x16xf32>
    %15 = vector.shape_cast %12 : vector<8x16xf32> to vector<1x8x16xf32>
    tpu.vector_store %arg4[%c0_4, %c0_5, %c0_6], %15 {strides = array<i32>} : memref<1x8x16xf32, #tpu.memory_space<vmem>>, vector<1x8x16xf32>,
    return
  }
  func.func @transform_0(%arg0: i32, %arg1: i32) -> (i32, i32, i32) {
    %c0_i32 = arith.constant 0 : i32
    %c0_i32_0 = arith.constant 0 : i32
    return %arg0, %arg1, %c0_i32 : i32, i32, i32
  }
  func.func @transform_1(%arg0: i32, %arg1: i32) -> (i32, i32) {
    %c0_i32 = arith.constant 0 : i32
    %c0_i32_0 = arith.constant 0 : i32
    %c0_i32_1 = arith.constant 0 : i32
    return %c0_i32, %c0_i32_0 : i32, i32
  }
  func.func @transform_2(%arg0: i32, %arg1: i32) -> (i32, i32, i32) {
    %c0_i32 = arith.constant 0 : i32
    %c0_i32_0 = arith.constant 0 : i32
    return %arg0, %c0_i32, %arg1 : i32, i32, i32
  }
}

</mosaic_0001>

<llo_original>
// kernel: cbr_1d.3
$region0: #{cbr_1d.3}
  #allocation0 [shape = 'u32[]', space=smem, size = 0x4, offset = 0x4, fixed_abs, tag = 'smem constant byte address 0x4 - core index']
  #allocation1 [shape = 'u32[144,128]{1,0:T(1,128)}', space=vmem, size = 0x12000, scoped, tag = 'internal scratch']
  %s0 = inlined_call_operand.vmem [shape: f32[2,16,128], index: 0, kind: input, shape index: {}]
  %s1 = inlined_call_operand.vmem [shape: f32[2,128], index: 1, kind: input, shape index: {}]
  %s2 = inlined_call_operand.hbm [shape: f32[2,8,16], index: 2, kind: output, shape index: {}]
  %s3 = sld [smem:[#allocation0]]
  $region41: #{cbr_1d.3} parent=0
    _
  %s5 = ssub.s32 1, %s3
  %s6 = scalar_select 0, %s5, %s3
  $region1: #{cbr_1d.3} parent=0
    #allocation2 [shape = 'u8[8192]{0}', space=vmem, size = 0x2000, scoped, tag = 'output window, operand 0']
    #allocation3 [shape = 's32[2]{0}', space=sflag, size = 0x8, scoped, tag = 'scoped memory for cbr_1d.3']
    %7 = vsyncpa [#allocation3], 0
    %s8 = scalar_lea.sflag [#allocation3], 1
    %9 = vsyncpa %s8, 0
    loop: start=0, step=1, limit=4
    $region2: #{cbr_1d.3} parent=1 // loop_pre_header
      _
    $region3: #{cbr_1d.3} parent=1 // loop_header
      %s11 = sphi 0, %s15
      %p12 = scmp.ge.s32.totalorder %s11, 4
      %s18 = sphi 0, %s30
      %s19 = sphi 0, %s26
      %s20 = sphi 0, %s18
      %s21 = sphi 0, %s19
      %s22 = sphi 0, %s20
      %s23 = sphi 0, %s21
      %s35 = sphi 0, %s37
      %s38 = sphi 0, %s35
      %s39 = sphi 0, %s38
      %s55 = sphi 0, %s39
      %s59 = sphi 0, %s59
      %s61 = sphi 0, %s59
      %s62 = sphi 0, %s61
      %s76 = sphi 0, %s62
      %s84 = sphi 0, %s86
      %s87 = sphi 0, %s84
      %s88 = sphi 0, %s87
      %s104 = sphi 0, %s88
    $region4: #{cbr_1d.3} parent=1 // loop_header_branch
      %14 = sbr.rel (%p12) target = $region8
    $region5: #{cbr_1d.3} parent=1 // loop_body
      %s16 = ssub.s32 %s11, 1
      %s17 = ssub.s32 %s11, 2
      %s24 = sadd.s32 1, %s19
      %p25 = scmp.ge.s32.totalorder %s24, 1
      %s26 = scalar_select %p25, 0, %s24
      %s27 = sadd.s32 1, %s18
      %s28 = scalar_select %p25, %s27, %s18
      %p29 = scmp.ge.s32.totalorder %s28, 2
      %s30 = scalar_select %p29, 0, %s28
      %s31 = ssub.s32 %s18, %s30
      %s32 = ssub.s32 %s19, %s26
      %s33 = sor.u32 %s31, %s32
      %p34 = scmp.eq.s32.totalorder %s33, 0
      %s36 = sadd.s32 %s35, 1
      %s37 = scalar_select %p34, %s35, %s36
      %p40 = pneg %p34
      %p41 = scmp.eq.s32.totalorder %s11, 1
      %p42 = por %p40, %p41
      %p43 = scmp.ne.s32.totalorder %s35, %s38
      %p44 = scmp.eq.s32.totalorder %s11, 0
      %p45 = por %p43, %p44
      %p46 = scmp.ne.s32.totalorder %s35, %s38
      %p47 = scmp.eq.s32.totalorder %s16, 1
      %p48 = por %p46, %p47
      %p49 = scmp.ne.s32.totalorder %s38, %s39
      %p50 = scmp.eq.s32.totalorder %s16, 0
      %p51 = por %p49, %p50
      %p52 = scmp.ne.s32.totalorder %s38, %s39
      %p53 = scmp.eq.s32.totalorder %s17, 1
      %p54 = por %p52, %p53
      %p56 = scmp.ne.s32.totalorder %s39, %s55
      %p57 = scmp.eq.s32.totalorder %s17, 0
      %p58 = por %p56, %p57
      %s60 = sadd.s32 %s59, 1
      %p63 = scmp.eq.s32.totalorder %s11, 1
      %p64 = scmp.ne.s32.totalorder %s59, %s61
      %p65 = scmp.eq.s32.totalorder %s11, 0
      %p66 = por %p64, %p65
      %p67 = scmp.ne.s32.totalorder %s59, %s61
      %p68 = scmp.eq.s32.totalorder %s16, 1
      %p69 = por %p67, %p68
      %p70 = scmp.ne.s32.totalorder %s61, %s62
      %p71 = scmp.eq.s32.totalorder %s16, 0
      %p72 = por %p70, %p71
      %p73 = scmp.ne.s32.totalorder %s61, %s62
      %p74 = scmp.eq.s32.totalorder %s17, 1
      %p75 = por %p73, %p74
      %p77 = scmp.ne.s32.totalorder %s62, %s76
      %p78 = scmp.eq.s32.totalorder %s17, 0
      %p79 = por %p77, %p78
      %s80 = ssub.s32 %s18, %s30
      %s81 = ssub.s32 %s19, %s26
      %s82 = sor.u32 %s80, %s81
      %p83 = scmp.eq.s32.totalorder %s82, 0
      %s85 = sadd.s32 %s84, 1
      %s86 = scalar_select %p83, %s84, %s85
      %p89 = pneg %p83
      %p90 = scmp.eq.s32.totalorder %s11, 1
      %p91 = por %p89, %p90
      %p92 = scmp.ne.s32.totalorder %s84, %s87
      %p93 = scmp.eq.s32.totalorder %s11, 0
      %p94 = por %p92, %p93
      %p95 = scmp.ne.s32.totalorder %s84, %s87
      %p96 = scmp.eq.s32.totalorder %s16, 1
      %p97 = por %p95, %p96
      %p98 = scmp.ne.s32.totalorder %s87, %s88
      %p99 = scmp.eq.s32.totalorder %s16, 0
      %p100 = por %p98, %p99
      %p101 = scmp.ne.s32.totalorder %s87, %s88
      %p102 = scmp.eq.s32.totalorder %s17, 1
      %p103 = por %p101, %p102
      %p105 = scmp.ne.s32.totalorder %s88, %s104
      %p106 = scmp.eq.s32.totalorder %s17, 0
      %p107 = por %p105, %p106
      %p108 = scmp.le.s32.totalorder 1, %s11
      %p109 = scmp.lt.s32.totalorder %s11, 3
      %p110 = pnand %p108, %p109
      %p111 = pneg %p110
      // Predicated region
      $region9: #{cbr_1d.3} parent=5 // pred_check
        _
      $region10: #{cbr_1d.3} parent=5 // pred_check_branch
        %113 = sbr.rel (%p110) target = $region12
      $region11: #{cbr_1d.3} parent=5 // pred_region
        %s114 = ssub.s32 %s11, 1
        // Predicated region
        $region13: #{cbr_1d.3} parent=11 // pred_check
          %p115 = pneg %p72
        $region14: #{cbr_1d.3} parent=11 // pred_check_branch
          %117 = sbr.rel (%p115) target = $region16
        $region15: #{cbr_1d.3} parent=11 // pred_region
          _
        $region16: #{cbr_1d.3} parent=11 // pred_fallthru
          _
      $region12: #{cbr_1d.3} parent=5 // pred_fallthru
        _
      %p118 = scmp.lt.s32.totalorder %s11, 2
      // Predicated region
      $region17: #{cbr_1d.3} parent=5 // pred_check
        %p119 = pneg %p118
      $region18: #{cbr_1d.3} parent=5 // pred_check_branch
        %121 = sbr.rel (%p119) target = $region20
      $region19: #{cbr_1d.3} parent=5 // pred_region
        // Predicated region
        $region21: #{cbr_1d.3} parent=19 // pred_check
          %p122 = pneg %p45
        $region22: #{cbr_1d.3} parent=19 // pred_check_branch
          %124 = sbr.rel (%p122) target = $region24
        $region23: #{cbr_1d.3} parent=19 // pred_region
          %s125 = smul.u32 2, %s19
          %p126 = scmp.lt.s32.totalorder %s18, 1
          %s127 = scalar_select %p126, %s18, 1
          %p128 = scmp.lt.s32.totalorder %s125, 1
          %s129 = scalar_select %p128, %s125, 1
          %s130 = smul.addr %s127, 2
          %s131 = sadd.s32 %s129, %s130
          %s132 = smul.addr %s131, 8
          %s133 = scalar_lea.vmem %s0, %s132
          %s134 = smul.u32 2, %s19
        $region24: #{cbr_1d.3} parent=19 // pred_fallthru
          _
      $region20: #{cbr_1d.3} parent=5 // pred_fallthru
        _
      %p135 = scmp.le.s32.totalorder 1, %s11
      %p136 = scmp.lt.s32.totalorder %s11, 3
      %p137 = pnand %p135, %p136
      %p138 = pneg %p137
      // Predicated region
      $region25: #{cbr_1d.3} parent=5 // pred_check
        _
      $region26: #{cbr_1d.3} parent=5 // pred_check_branch
        %140 = sbr.rel (%p137) target = $region28
      $region27: #{cbr_1d.3} parent=5 // pred_region
        %s141 = ssub.s32 %s11, 1
        %s142 = smul.u32 2, %s21
        %p143 = scmp.lt.s32.totalorder %s20, 1
        %s144 = scalar_select %p143, %s20, 1
        %p145 = scmp.lt.s32.totalorder %s142, 1
        %s146 = scalar_select %p145, %s142, 1
        %s147 = smul.addr %s144, 2
        %s148 = sadd.s32 %s146, %s147
        %s149 = smul.addr %s148, 8
        %s150 = scalar_lea.vmem %s0, %s149
        %p151 = pneg %p51
        %p152 = pneg %p48
        %p153 = pneg %p72
        %p154 = pneg %p69
        %p155 = pneg %p100
        %p156 = pneg %p97
        %s157 = sand.u32 %s87, 1
        %s158 = scalar_lea.sflag [#allocation3], %s157
        %s159 = sand.u32 %s87, 1
        %s160 = smul.addr %s159, 8
        %s161 = scalar_lea.vmem [#allocation2], %s160
        %s162 = smul.u32 2, %s21
        %p163 = scmp.lt.s32.totalorder %s20, 1
        %s164 = scalar_select %p163, %s20, 1
        %p165 = scmp.lt.s32.totalorder %s162, 1
        %s166 = scalar_select %p165, %s162, 1
        %s167 = smul.addr %s164, 2
        %s168 = sadd.s32 %s166, %s167
        %s169 = smul.addr %s168, 8
        %s170 = scalar_lea.vmem %s0, %s169
        %s171 = smul.u32 2, %s21
        %v172 = vld [vmem:[%s170] sm:$0xff]
        %v173 = vld [vmem:[%s170 + $0x8] sm:$0xff]
        %v174 = vld [vmem:[%s1] sm:$0x3]
        %v175 = vlaneseq
        %v176 = vshrl.u32 %v175, 7
        %v177 = vsub.s32 0, %v176
        %v178 = vrot.slane %v174, %v177
        %v179 = vmul.f32 %v172, %v178
        %v180 = vmul.f32 %v173, %v178
        %v181 = vlaneseq
        %v182 = vshrl.u32 %v181, 7
        %v183 = vsub.s32 1, %v182
        %v184 = vrot.slane %v174, %v183
        %v185 = vadd.f32 %v179, %v184
        %v186 = vadd.f32 %v180, %v184
        %v187 = vmax.f32 %v185, 0.0
        %v188 = vmax.f32 %v186, 0.0
        %189 = vxpose.xlu0.b32.start [1/16] %v187, 128
        %190 = vxpose.xlu0.b32.cont [2/16] %v188, 128
        %191 = vxpose.xlu0.b32.cont [3/16] 0.0, 128
        %192 = vxpose.xlu0.b32.cont [4/16] 0.0, 128
        %193 = vxpose.xlu0.b32.cont [5/16] 0.0, 128
        %194 = vxpose.xlu0.b32.cont [6/16] 0.0, 128
        %195 = vxpose.xlu0.b32.cont [7/16] 0.0, 128
        %196 = vxpose.xlu0.b32.cont [8/16] 0.0, 128
        %197 = vxpose.xlu0.b32.cont [9/16] 0.0, 128
        %198 = vxpose.xlu0.b32.cont [10/16] 0.0, 128
        %199 = vxpose.xlu0.b32.cont [11/16] 0.0, 128
        %200 = vxpose.xlu0.b32.cont [12/16] 0.0, 128
        %201 = vxpose.xlu0.b32.cont [13/16] 0.0, 128
        %202 = vxpose.xlu0.b32.cont [14/16] 0.0, 128
        %203 = vxpose.xlu0.b32.cont [15/16] 0.0, 128
        %204 = vxpose.xlu0.b32.end [16/16] 0.0, 128
        %v205 = vpop.trf.xlu0
        %v206 = vpop.trf.xlu0
        %v207 = vpop.trf.xlu0
        %v208 = vpop.trf.xlu0
        %v209 = vpop.trf.xlu0
        %v210 = vpop.trf.xlu0
        %v211 = vpop.trf.xlu0
        %v212 = vpop.trf.xlu0
        %v213 = vpop.trf.xlu0
        %v214 = vpop.trf.xlu0
        %v215 = vpop.trf.xlu0
        %v216 = vpop.trf.xlu0
        %v217 = vpop.trf.xlu0
        %v218 = vpop.trf.xlu0
        %v219 = vpop.trf.xlu0
        %v220 = vpop.trf.xlu0
        %vm221 = vcmask 130048
        %222 = vst.msk [vmem:[%s161] sm:$0xff] %vm221, %v205
        %s223 = sand.u32 %s87, 1
        %s224 = scalar_lea.sflag [#allocation3], %s223
        %s225 = sand.u32 %s87, 1
        %s226 = smul.addr %s225, 8
        %s227 = scalar_lea.vmem [#allocation2], %s226
        // Predicated region
        $region29: #{cbr_1d.3} parent=27 // pred_check
          %p228 = pneg %p97
        $region30: #{cbr_1d.3} parent=27 // pred_check_branch
          %230 = sbr.rel (%p228) target = $region32
        $region31: #{cbr_1d.3} parent=27 // pred_region
          %s232 = ssub.s32 128, 128
          %233 = vsyncadd %s224, %s232
          %s234 = sadd.s32 %s21, %s20
          %s235 = smul.addr %s234, 128
          %s236 = scalar_lea.hbm %s2, %s235
          %s238 = sshll.u32 %s227, 4
          %s239 = int_to_ptr.vmem [resolvable:$true] %s238
          %241 = dma.vmem_to_hbm [thread:$0]  %s239, 128, %s236, %s224
        $region32: #{cbr_1d.3} parent=27 // pred_fallthru
          _
      $region28: #{cbr_1d.3} parent=5 // pred_fallthru
        _
      %p242 = scmp.le.s32.totalorder 2, %s11
      // Predicated region
      $region33: #{cbr_1d.3} parent=5 // pred_check
        %p243 = pneg %p242
      $region34: #{cbr_1d.3} parent=5 // pred_check_branch
        %245 = sbr.rel (%p243) target = $region36
      $region35: #{cbr_1d.3} parent=5 // pred_region
        %s246 = ssub.s32 %s11, 2
        // Predicated region
        $region37: #{cbr_1d.3} parent=35 // pred_check
          %p247 = pneg %p103
        $region38: #{cbr_1d.3} parent=35 // pred_check_branch
          %249 = sbr.rel (%p247) target = $region40
        $region39: #{cbr_1d.3} parent=35 // pred_region
          %s250 = sand.u32 %s88, 1
          %s251 = scalar_lea.sflag [#allocation3], %s250
          %s252 = sand.u32 %s88, 1
          %s253 = smul.addr %s252, 8
          %s254 = scalar_lea.vmem [#allocation2], %s253
          %255 = dma.done %s251, 128
        $region40: #{cbr_1d.3} parent=35 // pred_fallthru
          _
      $region36: #{cbr_1d.3} parent=5 // pred_fallthru
        _
    $region6: #{cbr_1d.3} parent=1 // loop_footer
      %s15 = sadd.s32 1, %s11
    $region7: #{cbr_1d.3} parent=1 // loop_footer_branch
      %10 = sbr.rel target = $region3
    $region8: #{cbr_1d.3} parent=1 // loop_exit
      _
    %256 = vsyncpa [#allocation3], 1
    %s257 = scalar_lea.sflag [#allocation3], 1
    %258 = vsyncpa %s257, 1

// kernel: cbr_1d.2
$region0: #{cbr_1d.2}
  #allocation0 [shape = 'u32[]', space=smem, size = 0x4, offset = 0x4, fixed_abs, tag = 'smem constant byte address 0x4 - core index']
  #allocation1 [shape = 'u32[144,128]{1,0:T(1,128)}', space=vmem, size = 0x12000, scoped, tag = 'internal scratch']
  %s0 = inlined_call_operand.vmem [shape: f32[2,24,4], index: 0, kind: input, shape index: {}]
  %s1 = inlined_call_operand.vmem [shape: f32[36,128], index: 1, kind: input, shape index: {}]
  %s2 = inlined_call_operand.vmem [shape: f32[2,16,128], index: 2, kind: output, shape index: {0}]
  %s3 = inlined_call_operand.vmem [shape: f32[2,1,2,128], index: 3, kind: output, shape index: {1}]
  %4 = xla_tuple %s2, %s3
  %s5 = sld [smem:[#allocation0]]
  $region49: #{cbr_1d.2} parent=0
    _
  %s7 = ssub.s32 1, %s5
  %s8 = scalar_select 0, %s7, %s5
  loop: start=0, step=1, limit=4
  $region2: #{cbr_1d.2} parent=0 // loop_pre_header
    _
  $region3: #{cbr_1d.2} parent=0 // loop_header
    %s10 = sphi 0, %s14
    %p11 = scmp.ge.s32.totalorder %s10, 4
    %s17 = sphi 0, %s29
    %s18 = sphi 0, %s25
    %s19 = sphi 0, %s17
    %s20 = sphi 0, %s18
    %s21 = sphi 0, %s19
    %s22 = sphi 0, %s20
    %s32 = sphi 0, %s34
    %s35 = sphi 0, %s32
    %s36 = sphi 0, %s35
    %s52 = sphi 0, %s36
    %s56 = sphi 0, %s56
    %s58 = sphi 0, %s56
    %s59 = sphi 0, %s58
    %s73 = sphi 0, %s59
    %s81 = sphi 0, %s83
    %s84 = sphi 0, %s81
    %s85 = sphi 0, %s84
    %s101 = sphi 0, %s85
    %s109 = sphi 0, %s111
    %s112 = sphi 0, %s109
    %s113 = sphi 0, %s112
    %s129 = sphi 0, %s113
  $region4: #{cbr_1d.2} parent=0 // loop_header_branch
    %13 = sbr.rel (%p11) target = $region8
  $region5: #{cbr_1d.2} parent=0 // loop_body
    %s15 = ssub.s32 %s10, 1
    %s16 = ssub.s32 %s10, 2
    %s23 = sadd.s32 1, %s18
    %p24 = scmp.ge.s32.totalorder %s23, 1
    %s25 = scalar_select %p24, 0, %s23
    %s26 = sadd.s32 1, %s17
    %s27 = scalar_select %p24, %s26, %s17
    %p28 = scmp.ge.s32.totalorder %s27, 2
    %s29 = scalar_select %p28, 0, %s27
    %s30 = ssub.s32 %s17, %s29
    %p31 = scmp.eq.s32.totalorder %s30, 0
    %s33 = sadd.s32 %s32, 1
    %s34 = scalar_select %p31, %s32, %s33
    %p37 = pneg %p31
    %p38 = scmp.eq.s32.totalorder %s10, 1
    %p39 = por %p37, %p38
    %p40 = scmp.ne.s32.totalorder %s32, %s35
    %p41 = scmp.eq.s32.totalorder %s10, 0
    %p42 = por %p40, %p41
    %p43 = scmp.ne.s32.totalorder %s32, %s35
    %p44 = scmp.eq.s32.totalorder %s15, 1
    %p45 = por %p43, %p44
    %p46 = scmp.ne.s32.totalorder %s35, %s36
    %p47 = scmp.eq.s32.totalorder %s15, 0
    %p48 = por %p46, %p47
    %p49 = scmp.ne.s32.totalorder %s35, %s36
    %p50 = scmp.eq.s32.totalorder %s16, 1
    %p51 = por %p49, %p50
    %p53 = scmp.ne.s32.totalorder %s36, %s52
    %p54 = scmp.eq.s32.totalorder %s16, 0
    %p55 = por %p53, %p54
    %s57 = sadd.s32 %s56, 1
    %p60 = scmp.eq.s32.totalorder %s10, 1
    %p61 = scmp.ne.s32.totalorder %s56, %s58
    %p62 = scmp.eq.s32.totalorder %s10, 0
    %p63 = por %p61, %p62
    %p64 = scmp.ne.s32.totalorder %s56, %s58
    %p65 = scmp.eq.s32.totalorder %s15, 1
    %p66 = por %p64, %p65
    %p67 = scmp.ne.s32.totalorder %s58, %s59
    %p68 = scmp.eq.s32.totalorder %s15, 0
    %p69 = por %p67, %p68
    %p70 = scmp.ne.s32.totalorder %s58, %s59
    %p71 = scmp.eq.s32.totalorder %s16, 1
    %p72 = por %p70, %p71
    %p74 = scmp.ne.s32.totalorder %s59, %s73
    %p75 = scmp.eq.s32.totalorder %s16, 0
    %p76 = por %p74, %p75
    %s77 = ssub.s32 %s17, %s29
    %s78 = ssub.s32 %s18, %s25
    %s79 = sor.u32 %s77, %s78
    %p80 = scmp.eq.s32.totalorder %s79, 0
    %s82 = sadd.s32 %s81, 1
    %s83 = scalar_select %p80, %s81, %s82
    %p86 = pneg %p80
    %p87 = scmp.eq.s32.totalorder %s10, 1
    %p88 = por %p86, %p87
    %p89 = scmp.ne.s32.totalorder %s81, %s84
    %p90 = scmp.eq.s32.totalorder %s10, 0
    %p91 = por %p89, %p90
    %p92 = scmp.ne.s32.totalorder %s81, %s84
    %p93 = scmp.eq.s32.totalorder %s15, 1
    %p94 = por %p92, %p93
    %p95 = scmp.ne.s32.totalorder %s84, %s85
    %p96 = scmp.eq.s32.totalorder %s15, 0
    %p97 = por %p95, %p96
    %p98 = scmp.ne.s32.totalorder %s84, %s85
    %p99 = scmp.eq.s32.totalorder %s16, 1
    %p100 = por %p98, %p99
    %p102 = scmp.ne.s32.totalorder %s85, %s101
    %p103 = scmp.eq.s32.totalorder %s16, 0
    %p104 = por %p102, %p103
    %s105 = ssub.s32 %s17, %s29
    %s106 = ssub.s32 %s18, %s25
    %s107 = sor.u32 %s105, %s106
    %p108 = scmp.eq.s32.totalorder %s107, 0
    %s110 = sadd.s32 %s109, 1
    %s111 = scalar_select %p108, %s109, %s110
    %p114 = pneg %p108
    %p115 = scmp.eq.s32.totalorder %s10, 1
    %p116 = por %p114, %p115
    %p117 = scmp.ne.s32.totalorder %s109, %s112
    %p118 = scmp.eq.s32.totalorder %s10, 0
    %p119 = por %p117, %p118
    %p120 = scmp.ne.s32.totalorder %s109, %s112
    %p121 = scmp.eq.s32.totalorder %s15, 1
    %p122 = por %p120, %p121
    %p123 = scmp.ne.s32.totalorder %s112, %s113
    %p124 = scmp.eq.s32.totalorder %s15, 0
    %p125 = por %p123, %p124
    %p126 = scmp.ne.s32.totalorder %s112, %s113
    %p127 = scmp.eq.s32.totalorder %s16, 1
    %p128 = por %p126, %p127
    %p130 = scmp.ne.s32.totalorder %s113, %s129
    %p131 = scmp.eq.s32.totalorder %s16, 0
    %p132 = por %p130, %p131
    %p133 = scmp.le.s32.totalorder 1, %s10
    %p134 = scmp.lt.s32.totalorder %s10, 3
    %p135 = pnand %p133, %p134
    %p136 = pneg %p135
    // Predicated region
    $region9: #{cbr_1d.2} parent=5 // pred_check
      _
    $region10: #{cbr_1d.2} parent=5 // pred_check_branch
      %138 = sbr.rel (%p135) target = $region12
    $region11: #{cbr_1d.2} parent=5 // pred_region
      %s139 = ssub.s32 %s10, 1
      // Predicated region
      $region13: #{cbr_1d.2} parent=11 // pred_check
        %p140 = pneg %p69
      $region14: #{cbr_1d.2} parent=11 // pred_check_branch
        %142 = sbr.rel (%p140) target = $region16
      $region15: #{cbr_1d.2} parent=11 // pred_region
        _
      $region16: #{cbr_1d.2} parent=11 // pred_fallthru
        _
    $region12: #{cbr_1d.2} parent=5 // pred_fallthru
      _
    %p143 = scmp.lt.s32.totalorder %s10, 2
    // Predicated region
    $region17: #{cbr_1d.2} parent=5 // pred_check
      %p144 = pneg %p143
    $region18: #{cbr_1d.2} parent=5 // pred_check_branch
      %146 = sbr.rel (%p144) target = $region20
    $region19: #{cbr_1d.2} parent=5 // pred_region
      // Predicated region
      $region21: #{cbr_1d.2} parent=19 // pred_check
        %p147 = pneg %p42
      $region22: #{cbr_1d.2} parent=19 // pred_check_branch
        %149 = sbr.rel (%p147) target = $region24
      $region23: #{cbr_1d.2} parent=19 // pred_region
        %p150 = scmp.lt.s32.totalorder %s17, 1
        %s151 = scalar_select %p150, %s17, 1
        %s152 = smul.addr %s151, 3
        %s153 = smul.addr %s152, 8
        %s154 = scalar_lea.vmem %s0, %s153
      $region24: #{cbr_1d.2} parent=19 // pred_fallthru
        _
    $region20: #{cbr_1d.2} parent=5 // pred_fallthru
      _
    %p155 = scmp.le.s32.totalorder 1, %s10
    %p156 = scmp.lt.s32.totalorder %s10, 3
    %p157 = pnand %p155, %p156
    %p158 = pneg %p157
    // Predicated region
    $region25: #{cbr_1d.2} parent=5 // pred_check
      _
    $region26: #{cbr_1d.2} parent=5 // pred_check_branch
      %160 = sbr.rel (%p157) target = $region28
    $region27: #{cbr_1d.2} parent=5 // pred_region
      %s161 = ssub.s32 %s10, 1
      %p162 = scmp.lt.s32.totalorder %s19, 1
      %s163 = scalar_select %p162, %s19, 1
      %s164 = smul.addr %s163, 3
      %s165 = smul.addr %s164, 8
      %s166 = scalar_lea.vmem %s0, %s165
      %p167 = pneg %p48
      %p168 = pneg %p45
      %p169 = pneg %p69
      %p170 = pneg %p66
      %p171 = pneg %p97
      %p172 = pneg %p94
      %s173 = smul.u32 2, %s20
      %p174 = scmp.lt.s32.totalorder %s19, 1
      %s175 = scalar_select %p174, %s19, 1
      %p176 = scmp.lt.s32.totalorder %s173, 1
      %s177 = scalar_select %p176, %s173, 1
      %s178 = smul.addr %s175, 2
      %s179 = sadd.s32 %s177, %s178
      %s180 = smul.addr %s179, 8
      %s181 = scalar_lea.vmem %s2, %s180
      %p182 = pneg %p125
      %p183 = pneg %p122
      %p184 = scmp.lt.s32.totalorder %s19, 1
      %s185 = scalar_select %p184, %s19, 1
      %p186 = scmp.lt.s32.totalorder %s20, 0
      %s187 = scalar_select %p186, %s20, 0
      %s188 = sadd.s32 %s187, %s185
      %s189 = smul.addr %s188, 2
      %s190 = scalar_lea.vmem %s3, %s189
      %p191 = scmp.lt.s32.totalorder %s19, 1
      %s192 = scalar_select %p191, %s19, 1
      %s193 = smul.addr %s192, 3
      %s194 = smul.addr %s193, 8
      %s195 = scalar_lea.vmem %s0, %s194
      %s196 = smul.u32 2, %s20
      %p197 = scmp.lt.s32.totalorder %s19, 1
      %s198 = scalar_select %p197, %s19, 1
      %p199 = scmp.lt.s32.totalorder %s196, 1
      %s200 = scalar_select %p199, %s196, 1
      %s201 = smul.addr %s198, 2
      %s202 = sadd.s32 %s200, %s201
      %s203 = smul.addr %s202, 8
      %s204 = scalar_lea.vmem %s2, %s203
      %s205 = smul.u32 2, %s20
      %p206 = scmp.lt.s32.totalorder %s19, 1
      %s207 = scalar_select %p206, %s19, 1
      %p208 = scmp.lt.s32.totalorder %s20, 0
      %s209 = scalar_select %p208, %s20, 0
      %s210 = sadd.s32 %s209, %s207
      %s211 = smul.addr %s210, 2
      %s212 = scalar_lea.vmem %s3, %s211
      %s213 = smul.u32 %s20, 16
      %s214 = scalar_lea.vmem %s195, %s213
      %v215 = vld [vmem:[%s214] sm:$0xff]
      %v216 = vld [vmem:[%s214 + $0x8] sm:$0xff]
      %s217 = sadd.s32 %s213, 1
      %s218 = scalar_lea.vmem %s195, %s217
      %v219 = vld [vmem:[%s218] sm:$0xff]
      %v220 = vld [vmem:[%s218 + $0x8] sm:$0xff]
      %s221 = sadd.s32 %s213, 2
      %s222 = scalar_lea.vmem %s195, %s221
      %v223 = vld [vmem:[%s222] sm:$0xff]
      %v224 = vld [vmem:[%s222 + $0x8] sm:$0xff]
      %s225 = sadd.s32 %s213, 3
      %s226 = scalar_lea.vmem %s195, %s225
      %v227 = vld [vmem:[%s226] sm:$0xff]
      %v228 = vld [vmem:[%s226 + $0x8] sm:$0xff]
      %s229 = sadd.s32 %s213, 4
      %s230 = scalar_lea.vmem %s195, %s229
      %v231 = vld [vmem:[%s230] sm:$0xff]
      %v232 = vld [vmem:[%s230 + $0x8] sm:$0xff]
      %s233 = sadd.s32 %s213, 5
      %s234 = scalar_lea.vmem %s195, %s233
      %v235 = vld [vmem:[%s234] sm:$0xff]
      %v236 = vld [vmem:[%s234 + $0x8] sm:$0xff]
      %s237 = sadd.s32 %s213, 6
      %s238 = scalar_lea.vmem %s195, %s237
      %v239 = vld [vmem:[%s238] sm:$0xff]
      %v240 = vld [vmem:[%s238 + $0x8] sm:$0xff]
      %s241 = sadd.s32 %s213, 7
      %s242 = scalar_lea.vmem %s195, %s241
      %v243 = vld [vmem:[%s242] sm:$0xff]
      %v244 = vld [vmem:[%s242 + $0x8] sm:$0xff]
      %s245 = sadd.s32 %s213, 8
      %s246 = scalar_lea.vmem %s195, %s245
      %v247 = vld [vmem:[%s246] sm:$0xff]
      %v248 = vld [vmem:[%s246 + $0x8] sm:$0xff]
      %251 = vrot.lane.b32.xlu0 %v219, 4
      %v252 = vpop.permute.xlu0 %251
      %253 = vrot.lane.b32.xlu0 %v220, 4
      %v254 = vpop.permute.xlu0 %253
      %259 = vrot.lane.b32.xlu0 %v223, 8
      %v260 = vpop.permute.xlu0 %259
      %261 = vrot.lane.b32.xlu0 %v224, 8
      %v262 = vpop.permute.xlu0 %261
      %267 = vrot.lane.b32.xlu0 %v227, 12
      %v268 = vpop.permute.xlu0 %267
      %269 = vrot.lane.b32.xlu0 %v228, 12
      %v270 = vpop.permute.xlu0 %269
      %275 = vrot.lane.b32.xlu0 %v231, 16
      %v276 = vpop.permute.xlu0 %275
      %277 = vrot.lane.b32.xlu0 %v232, 16
      %v278 = vpop.permute.xlu0 %277
      %283 = vrot.lane.b32.xlu0 %v235, 20
      %v284 = vpop.permute.xlu0 %283
      %285 = vrot.lane.b32.xlu0 %v236, 20
      %v286 = vpop.permute.xlu0 %285
      %291 = vrot.lane.b32.xlu0 %v239, 24
      %v292 = vpop.permute.xlu0 %291
      %293 = vrot.lane.b32.xlu0 %v240, 24
      %v294 = vpop.permute.xlu0 %293
      %299 = vrot.lane.b32.xlu0 %v243, 28
      %v300 = vpop.permute.xlu0 %299
      %301 = vrot.lane.b32.xlu0 %v244, 28
      %v302 = vpop.permute.xlu0 %301
      %307 = vrot.lane.b32.xlu0 %v247, 32
      %v308 = vpop.permute.xlu0 %307
      %309 = vrot.lane.b32.xlu0 %v248, 32
      %v310 = vpop.permute.xlu0 %309
      %vm313 = vcmask 31744
      %v314 = vsel %vm313, %v215, %v252
      %v315 = vsel %vm313, %v216, %v254
      %vm316 = vcmask 64512
      %v317 = vsel %vm316, %v314, %v260
      %v318 = vsel %vm316, %v315, %v262
      %vm319 = vcmask 97280
      %v320 = vsel %vm319, %v317, %v268
      %v321 = vsel %vm319, %v318, %v270
      %vm322 = vcmask 130048
      %v323 = vsel %vm322, %v320, %v276
      %v324 = vsel %vm322, %v321, %v278
      %vm325 = vcmask 162816
      %v326 = vsel %vm325, %v323, %v284
      %v327 = vsel %vm325, %v324, %v286
      %vm328 = vcmask 195584
      %v329 = vsel %vm328, %v326, %v292
      %v330 = vsel %vm328, %v327, %v294
      %vm331 = vcmask 228352
      %v332 = vsel %vm331, %v329, %v300
      %v333 = vsel %vm331, %v330, %v302
      %vm334 = vcmask 261120
      %v335 = vsel %vm334, %v332, %v308
      %v336 = vsel %vm334, %v333, %v310
      %v337 = vld [vmem:[%s1] sm:$0xff]
      %v338 = vld [vmem:[%s1 + $0x8] sm:$0xff]
      %v339 = vld [vmem:[%s1 + $0x10] sm:$0xff]
      %v340 = vld [vmem:[%s1 + $0x18] sm:$0xff]
      %v341 = vld [vmem:[%s1 + $0x20] sm:$0xf]
      %vm342 = vcmask 293888
      %v344 = vsel %vm342, %v335, 0
      %v347 = vsel %vm342, %v336, 0
      %vm349 = vcmask 1043456
      %v351 = vsel %vm349, %v341, 0
      %353 = vmatprep.subr.mxu0 0.0
      %354 = vmatpush1.msra.mxu0 %v337
      %355 = vmatprep.subr.mxu0 0.0
      %356 = vmatpush1.msra.mxu0 %v338
      %357 = vmatprep.subr.mxu0 0.0
      %358 = vmatpush1.msra.mxu0 %v339
      %359 = vmatprep.subr.mxu0 0.0
      %360 = vmatpush1.msra.mxu0 %v340
      %361 = vmatprep.subr.mxu0 0.0
      %362 = vmatpush1.msra.mxu0 %v351
      %363 = vmatprep.subr.mxu0 0.0
      %364 = vmatpush1.msra.mxu0 0.0
      %365 = vmatprep.subr.mxu0 0.0
      %366 = vmatpush1.msra.mxu0 0.0
      %367 = vmatprep.subr.mxu0 0.0
      %368 = vmatpush1.msra.mxu0 0.0
      %369 = vmatprep.subr.mxu0 0.0
      %370 = vmatpush1.msra.mxu0 0.0
      %371 = vmatprep.subr.mxu0 0.0
      %372 = vmatpush1.msra.mxu0 0.0
      %373 = vmatprep.subr.mxu0 0.0
      %374 = vmatpush1.msra.mxu0 0.0
      %375 = vmatprep.subr.mxu0 0.0
      %376 = vmatpush1.msra.mxu0 0.0
      %377 = vmatprep.subr.mxu0 0.0
      %378 = vmatpush1.msra.mxu0 0.0
      %379 = vmatprep.subr.mxu0 0.0
      %380 = vmatpush1.msra.mxu0 0.0
      %381 = vmatprep.subr.mxu0 0.0
      %382 = vmatpush1.msra.mxu0 0.0
      %383 = vmatprep.subr.mxu0 0.0
      %384 = vmatpush1.msra.mxu0 0.0
      %385 = vmatprep.subr.mxu0 0.0
      %386 = vmatpush1.msra.mxu0 0.0
      %387 = vmatprep.subr.mxu0 0.0
      %388 = vmatpush1.msra.mxu0 0.0
      %389 = vmatprep.subr.mxu0 0.0
      %390 = vmatpush1.msra.mxu0 0.0
      %391 = vmatprep.subr.mxu0 0.0
      %392 = vmatpush1.msra.mxu0 0.0
      %393 = vmatprep.subr.mxu0 0.0
      %394 = vmatpush1.msra.mxu0 0.0
      %395 = vmatprep.subr.mxu0 0.0
      %396 = vmatpush1.msra.mxu0 0.0
      %397 = vmatprep.subr.mxu0 0.0
      %398 = vmatpush1.msra.mxu0 0.0
      %399 = vmatprep.subr.mxu0 0.0
      %400 = vmatpush1.msra.mxu0 0.0
      %401 = vmatprep.subr.mxu0 0.0
      %402 = vmatpush1.msra.mxu0 0.0
      %403 = vmatprep.subr.mxu0 0.0
      %404 = vmatpush1.msra.mxu0 0.0
      %405 = vmatprep.subr.mxu0 0.0
      %406 = vmatpush1.msra.mxu0 0.0
      %407 = vmatprep.subr.mxu0 0.0
      %408 = vmatpush1.msra.mxu0 0.0
      %409 = vmatprep.subr.mxu0 0.0
      %410 = vmatpush1.msra.mxu0 0.0
      %411 = vmatprep.subr.mxu0 0.0
      %412 = vmatpush1.msra.mxu0 0.0
      %413 = vmatprep.subr.mxu0 0.0
      %414 = vmatpush1.msra.mxu0 0.0
      %415 = vmatprep.subr.mxu0 0.0
      %416 = vmatpush1.msra.mxu0 0.0
      %417 = vmatprep.mubr.f32.mxu0 0.0
      %418 = vmatmul.mubr.f32.gmra.mrb[0].mxu0 %v344
      %v419 = vpop.f32.mrb[0].mxu0
      %v420 = vadd.f32 0.0, %v419
      %v421 = vpop.f32.mrb[0].mxu0
      %422 = vmatprep.mubr.f32.mxu0 0.0
      %423 = vmatmul.mubr.f32.gmra.mrb[0].mxu0 %v347
      %v424 = vpop.f32.mrb[0].mxu0
      %v425 = vadd.f32 0.0, %v424
      %v426 = vpop.f32.mrb[0].mxu0
      %427 = vdwg.mxu0
      %v428 = vlaneseq
      %v429 = vshrl.u32 %v428, 7
      %v430 = vadd.s32 %v429, 8
      %v431 = vstv %s213
      %v432 = vadd.s32 %v429, %v431
      %v433 = vadd.s32 %v430, %v431
      %vm434 = vcmp.lt.s32.totalorder %v432, 16
      %vm435 = vcmp.lt.s32.totalorder %v433, 16
      %v436 = vsel %vm434, 1, 0
      %v437 = vsel %vm435, 1, 0
      %v438 = vcvt.s32.f32 %v436
      %v439 = vcvt.s32.f32 %v437
      %v440 = vmul.f32 %v420, %v438
      %v441 = vmul.f32 %v425, %v439
      %v442 = vadd.f32 %v440, %v441
      %v443 = vrot.slane %v442, 4
      %v444 = vadd.f32 %v442, %v443
      %v445 = vrot.slane %v444, 2
      %v446 = vadd.f32 %v444, %v445
      %v447 = vrot.slane %v446, 1
      %v448 = vadd.f32 %v446, %v447
      %v449 = vmul.f32 %v440, %v420
      %v450 = vmul.f32 %v441, %v425
      %v451 = vadd.f32 %v449, %v450
      %v452 = vrot.slane %v451, 4
      %v453 = vadd.f32 %v451, %v452
      %v454 = vrot.slane %v453, 2
      %v455 = vadd.f32 %v453, %v454
      %v456 = vrot.slane %v455, 1
      %v457 = vadd.f32 %v455, %v456
      %vm458 = vcmask 1040384
      %v459 = vsel %vm458, %v448, %v457
      %460 = vst [vmem:[%s212] sm:$0x3] %v459
      %461 = vst [vmem:[%s204] sm:$0xff] %v420
      %462 = vst [vmem:[%s204 + $0x8] sm:$0xff] %v425
      %s463 = smul.u32 2, %s20
      %p464 = scmp.lt.s32.totalorder %s19, 1
      %s465 = scalar_select %p464, %s19, 1
      %p466 = scmp.lt.s32.totalorder %s463, 1
      %s467 = scalar_select %p466, %s463, 1
      %s468 = smul.addr %s465, 2
      %s469 = sadd.s32 %s467, %s468
      %s470 = smul.addr %s469, 8
      %s471 = scalar_lea.vmem %s2, %s470
      %p472 = scmp.lt.s32.totalorder %s19, 1
      %s473 = scalar_select %p472, %s19, 1
      %p474 = scmp.lt.s32.totalorder %s20, 0
      %s475 = scalar_select %p474, %s20, 0
      %s476 = sadd.s32 %s475, %s473
      %s477 = smul.addr %s476, 2
      %s478 = scalar_lea.vmem %s3, %s477
      // Predicated region
      $region29: #{cbr_1d.2} parent=27 // pred_check
        %p479 = pneg %p94
      $region30: #{cbr_1d.2} parent=27 // pred_check_branch
        %481 = sbr.rel (%p479) target = $region32
      $region31: #{cbr_1d.2} parent=27 // pred_region
        %s482 = smul.u32 2, %s20
      $region32: #{cbr_1d.2} parent=27 // pred_fallthru
        _
      // Predicated region
      $region33: #{cbr_1d.2} parent=27 // pred_check
        %p483 = pneg %p122
      $region34: #{cbr_1d.2} parent=27 // pred_check_branch
        %485 = sbr.rel (%p483) target = $region36
      $region35: #{cbr_1d.2} parent=27 // pred_region
        _
      $region36: #{cbr_1d.2} parent=27 // pred_fallthru
        _
    $region28: #{cbr_1d.2} parent=5 // pred_fallthru
      _
    %p486 = scmp.le.s32.totalorder 2, %s10
    // Predicated region
    $region37: #{cbr_1d.2} parent=5 // pred_check
      %p487 = pneg %p486
    $region38: #{cbr_1d.2} parent=5 // pred_check_branch
      %489 = sbr.rel (%p487) target = $region40
    $region39: #{cbr_1d.2} parent=5 // pred_region
      %s490 = ssub.s32 %s10, 2
      // Predicated region
      $region41: #{cbr_1d.2} parent=39 // pred_check
        %p491 = pneg %p100
      $region42: #{cbr_1d.2} parent=39 // pred_check_branch
        %493 = sbr.rel (%p491) target = $region44
      $region43: #{cbr_1d.2} parent=39 // pred_region
        %s494 = smul.u32 2, %s22
        %p495 = scmp.lt.s32.totalorder %s21, 1
        %s496 = scalar_select %p495, %s21, 1
        %p497 = scmp.lt.s32.totalorder %s494, 1
        %s498 = scalar_select %p497, %s494, 1
        %s499 = smul.addr %s496, 2
        %s500 = sadd.s32 %s498, %s499
        %s501 = smul.addr %s500, 8
        %s502 = scalar_lea.vmem %s2, %s501
      $region44: #{cbr_1d.2} parent=39 // pred_fallthru
        _
      // Predicated region
      $region45: #{cbr_1d.2} parent=39 // pred_check
        %p503 = pneg %p128
      $region46: #{cbr_1d.2} parent=39 // pred_check_branch
        %505 = sbr.rel (%p503) target = $region48
      $region47: #{cbr_1d.2} parent=39 // pred_region
        %p506 = scmp.lt.s32.totalorder %s21, 1
        %s507 = scalar_select %p506, %s21, 1
        %p508 = scmp.lt.s32.totalorder %s22, 0
        %s509 = scalar_select %p508, %s22, 0
        %s510 = sadd.s32 %s509, %s507
        %s511 = smul.addr %s510, 2
        %s512 = scalar_lea.vmem %s3, %s511
      $region48: #{cbr_1d.2} parent=39 // pred_fallthru
        _
    $region40: #{cbr_1d.2} parent=5 // pred_fallthru
      _
  $region6: #{cbr_1d.2} parent=0 // loop_footer
    %s14 = sadd.s32 1, %s10
  $region7: #{cbr_1d.2} parent=0 // loop_footer_branch
    %9 = sbr.rel target = $region3
  $region8: #{cbr_1d.2} parent=0 // loop_exit
    _

</llo_original>
